<compile_context>
chip_gen: v7x
topology: tpu7x:2x2x1
jax: 0.10.0
libtpu: 0.0.40
codegen_flags: <defaults>
</compile_context>

<pallas_src>
import functools

import jax
import jax.numpy as jnp
from jax.experimental import pallas as pl
from jax.experimental.pallas import tpu as pltpu

INPUT_DIM = 1
HIDDEN = (24, 24)
NEG_SLOPE = 0.01          # nn.LeakyReLU default
_LANES = 128
_MAX_TILE = 8192          # lane-tile cap; (32, 8192) f32 activations ~ 1 MiB << VMEM


def _round_up(x, m):
    return ((x + m - 1) // m) * m


def _leaky_relu(x, neg_slope=NEG_SLOPE):
    return jnp.where(x >= 0, x, neg_slope * x)


def _disc_kernel(p_ref, q_ref, w1_ref, w2_ref, w3_ref,
                 ps_ref, qs_ref, pm_ref, qm_ref, *, n_p, n_q, inv_np, inv_nq):
    """Fused 3-layer MLP on a lane-tile of p and q samples (batch on lanes).
    All matmuls + bias adds run on the MXU (ones-row augmentation); the p/q
    score-mean reduction is accumulated in-kernel."""
    i = pl.program_id(0)
    d, tile = p_ref.shape
    ka1 = w1_ref.shape[1]          # sublane-padded (input_dim + 1)

    w1a = w1_ref[...]              # (HA, KA1): rows :24 = [w1 | b1 | 0], row 24 = 1-selector
    w2a = w2_ref[...]              # (HA, HA):  rows :24 = [w2 | b2 | 0], row 24 = 1-selector
    w3a = w3_ref[...]              # (8,  HA):  row 0   = [w3 | b3 | 0]

    def augment(x):
        # Build [x ; 1 ; *] of shape (ka1, tile).  Rows > input_dim hit zero
        # columns of w1a, so their content is irrelevant (and lane-local).
        if d == 1:
            row = jax.lax.broadcasted_iota(jnp.int32, (ka1, tile), 0)
            xb = jnp.broadcast_to(x, (ka1, tile))
            return jnp.where(row == d, 1.0, xb)
        pieces = [x, jnp.ones((1, tile), jnp.float32)]
        if ka1 > d + 1:
            pieces.append(jnp.zeros((ka1 - d - 1, tile), jnp.float32))
        return jnp.concatenate(pieces, axis=0)

    def mlp(x):
        x_aug = augment(x.astype(jnp.float32))
        # Layer 1 (+ b1) and the ones-row propagation, on the MXU.
        h1 = _leaky_relu(jnp.dot(w1a, x_aug, preferred_element_type=jnp.float32))
        # Layer 2 (+ b2); h1's ones row feeds the bias column, leaky(1) == 1.
        h2 = _leaky_relu(jnp.dot(w2a, h1, preferred_element_type=jnp.float32))
        # Layer 3 (+ b3); padded to 8 output rows so the MXU result pop is dense.
        s8 = jnp.dot(w3a, h2, preferred_element_type=jnp.float32)
        return s8[0:1, :]                                   # (1, tile) scores

    lane = i * tile + jax.lax.broadcasted_iota(jnp.int32, (1, tile), 1)

    s_p = jnp.where(lane < n_p, mlp(p_ref[...]), 0.0)       # zero padded lanes
    s_q = jnp.where(lane < n_q, mlp(q_ref[...]), 0.0)
    ps_ref[...] = s_p
    qs_ref[...] = s_q

    # Fused mean epilogue: resident (1,1) accumulators across the grid.
    @pl.when(i == 0)
    def _():
        pm_ref[...] = jnp.zeros_like(pm_ref)
        qm_ref[...] = jnp.zeros_like(qm_ref)

    pm_ref[...] += jnp.sum(s_p, keepdims=True) * inv_np
    qm_ref[...] += jnp.sum(s_q, keepdims=True) * inv_nq


def augment_params(params):
    """Fold PyTorch-layout (W, b) params into MXU-friendly, sublane-aligned
    augmented matrices: [W | b] plus a selector row that carries a constant 1
    through the network (leaky_relu(1) == 1), so every bias add happens inside
    a matmul.  Call once per parameter update, outside the hot forward."""
    w1 = params["w1"].astype(jnp.float32)
    b1 = params["b1"].astype(jnp.float32).reshape(-1)
    w2 = params["w2"].astype(jnp.float32)
    b2 = params["b2"].astype(jnp.float32).reshape(-1)
    w3 = params["w3"].astype(jnp.float32)
    b3 = params["b3"].astype(jnp.float32).reshape(-1)
    h1, d = w1.shape
    h2 = w2.shape[0]
    ka1 = _round_up(d + 1, 8)
    ha1 = _round_up(h1 + 1, 8)
    ha2 = _round_up(h2 + 1, 8)

    w1a = jnp.zeros((ha1, ka1), jnp.float32)
    w1a = w1a.at[:h1, :d].set(w1).at[:h1, d].set(b1).at[h1, d].set(1.0)
    w2a = jnp.zeros((ha2, ha1), jnp.float32)
    w2a = w2a.at[:h2, :h1].set(w2).at[:h2, h1].set(b2).at[h2, h1].set(1.0)
    w3a = jnp.zeros((8, ha2), jnp.float32)
    w3a = w3a.at[0, :h2].set(w3.reshape(-1)).at[0, h2].set(b3[0])
    return w1a, w2a, w3a


@jax.jit
def adversarial_forward(p_samples, q_samples, w1a, w2a, w3a):
    """Fused Pallas equivalent of the module's discriminator hot path:
    p_values = D(p_samples), q_values = D(q_samples), plus the fused score
    means a concrete discriminator_loss / generator_loss would consume."""
    n_p, d = p_samples.shape
    n_q, d_q = q_samples.shape
    assert d == d_q
    assert w1a.shape[1] >= d + 1

    # Pick the tile first, then pad n UP to a multiple of it (never collapses
    # to 128-lane tiles).
    n_lanes = _round_up(max(n_p, n_q, 1), _LANES)
    tile = min(_MAX_TILE, n_lanes)
    n_pad = _round_up(n_lanes, tile)
    nb = n_pad // tile

    def lane_major(x, n):
        x = x.astype(jnp.float32)
        xt = x.reshape(1, n) if d == 1 else x.T          # batch on lanes
        if n_pad != n:
            xt = jnp.pad(xt, ((0, 0), (0, n_pad - n)))
        return xt

    p_x = lane_major(p_samples, n_p)
    q_x = lane_major(q_samples, n_q)

    kernel = functools.partial(
        _disc_kernel, n_p=n_p, n_q=n_q,
        inv_np=1.0 / max(n_p, 1), inv_nq=1.0 / max(n_q, 1))

    def full(a):  # whole (tiny) weight resident as one block across the grid
        return pl.BlockSpec(a.shape, lambda i: (0, 0))

    p_scores, q_scores, p_mean, q_mean = pl.pallas_call(
        kernel,
        out_shape=(
            jax.ShapeDtypeStruct((1, n_pad), jnp.float32),   # lane-dense p scores
            jax.ShapeDtypeStruct((1, n_pad), jnp.float32),   # lane-dense q scores
            jax.ShapeDtypeStruct((1, 1), jnp.float32),       # mean(p scores)
            jax.ShapeDtypeStruct((1, 1), jnp.float32),       # mean(q scores)
        ),
        grid=(nb,),
        in_specs=[
            pl.BlockSpec((d, tile), lambda i: (0, i)),
            pl.BlockSpec((d, tile), lambda i: (0, i)),
            full(w1a), full(w2a), full(w3a),
        ],
        out_specs=(
            pl.BlockSpec((1, tile), lambda i: (0, i)),
            pl.BlockSpec((1, tile), lambda i: (0, i)),
            pl.BlockSpec((1, 1), lambda i: (0, 0)),          # resident accumulators
            pl.BlockSpec((1, 1), lambda i: (0, 0)),
        ),
        compiler_params=pltpu.CompilerParams(
            # Accumulating the means across tiles needs a sequential axis; on
            # single-TC v5e/v6e "parallel" buys nothing anyway.
            dimension_semantics=("arbitrary",)),
    )(p_x, q_x, w1a, w2a, w3a)

    p_values = p_scores[0, :n_p].reshape(n_p, 1)
    q_values = q_scores[0, :n_q].reshape(n_q, 1)
    return p_values, q_values, p_mean[0, 0], q_mean[0, 0]


def init_params(key, input_dim=INPUT_DIM, hidden_sizes=HIDDEN):
    """PyTorch nn.Linear-style init: weight (out_features, in_features),
    bias (out_features,), both U(-1/sqrt(fan_in), 1/sqrt(fan_in))."""
    sizes = [input_dim, *hidden_sizes, 1]
    params = {}
    for i in range(len(sizes) - 1):
        fan_in, fan_out = sizes[i], sizes[i + 1]
        key, kw, kb = jax.random.split(key, 3)
        bound = 1.0 / float(fan_in) ** 0.5
        params[f"w{i + 1}"] = jax.random.uniform(
            kw, (fan_out, fan_in), jnp.float32, -bound, bound)
        params[f"b{i + 1}"] = jax.random.uniform(
            kb, (fan_out,), jnp.float32, -bound, bound)
    return params


def reference_forward(x, params):
    """Pure-JAX reference of the same MLP in the standard (batch, features)
    layout; valid for any input_dim."""
    hi = jax.lax.Precision.HIGHEST
    h = _leaky_relu(jnp.dot(x, params["w1"].T, precision=hi) + params["b1"])
    h = _leaky_relu(jnp.dot(h, params["w2"].T, precision=hi) + params["b2"])
    return jnp.dot(h, params["w3"].T, precision=hi) + params["b3"]


# TODO(synk): discriminator_loss / generator_loss are abstract in the module (no body
#             to translate); the kernel exposes the fused score means they would consume.
# TODO(synk): RMSprop optimizer.step, loss.backward and the autograd-based gradient
#             penalty are host-side training ops, not forward kernel compute.

if __name__ == "__main__":
    key = jax.random.PRNGKey(0)
    kp, kq, kparams = jax.random.split(key, 3)

    batch_size = 64                                  # module's default forward batch
    params = init_params(kparams)
    w1a, w2a, w3a = augment_params(params)           # once per parameter update

    # p_model.sample(batch_size) / q_model.sample(batch_size) stand-ins.
    p_samples = jax.random.normal(kp, (batch_size, INPUT_DIM), jnp.float32)
    q_samples = jax.random.normal(kq, (batch_size, INPUT_DIM), jnp.float32)

    p_values, q_values, p_mean, q_mean = adversarial_forward(
        p_samples, q_samples, w1a, w2a, w3a)
    jax.block_until_ready((p_values, q_values, p_mean, q_mean))

    # Correctness check against a pure-JAX reference of the same MLP.
    p_ref = reference_forward(p_samples, params)
    q_ref = reference_forward(q_samples, params)
    assert p_values.shape == (batch_size, 1) and q_values.shape == (batch_size, 1)
    assert jnp.allclose(p_values, p_ref, atol=1e-4, rtol=1e-4)
    assert jnp.allclose(q_values, q_ref, atol=1e-4, rtol=1e-4)
    assert jnp.allclose(p_mean, p_ref.mean(), atol=1e-4, rtol=1e-4)
    assert jnp.allclose(q_mean, q_ref.mean(), atol=1e-4, rtol=1e-4)

    print("KERNEL_OK")
</pallas_src>

<mosaic_0001>
module attributes {stable_mosaic.version = 11 : i64} {
  func.func @_disc_kernel(%arg0: i32, %arg1: memref<1x128xf32, #tpu.memory_space<vmem>>, %arg2: memref<1x128xf32, #tpu.memory_space<vmem>>, %arg3: memref<32x8xf32, #tpu.memory_space<vmem>>, %arg4: memref<32x32xf32, #tpu.memory_space<vmem>>, %arg5: memref<8x32xf32, #tpu.memory_space<vmem>>, %arg6: memref<1x128xf32, #tpu.memory_space<vmem>>, %arg7: memref<1x128xf32, #tpu.memory_space<vmem>>, %arg8: memref<1x1xf32, #tpu.memory_space<vmem>>, %arg9: memref<1x1xf32, #tpu.memory_space<vmem>>) attributes {dimension_semantics = [#tpu.dimension_semantics<arbitrary>], iteration_bounds = array<i64: 1>, scalar_prefetch = 0 : i64, scratch_operands = 0 : i64, tpu.core_type = #tpu.core_type<tc>, window_params = [{transform_indices = @transform_0, window_bounds = array<i64: 1, 128>}, {transform_indices = @transform_1, window_bounds = array<i64: 1, 128>}, {pipeline_mode = #tpu.pipeline_mode<synchronous>, transform_indices = @transform_2, window_bounds = array<i64: 32, 8>}, {pipeline_mode = #tpu.pipeline_mode<synchronous>, transform_indices = @transform_3, window_bounds = array<i64: 32, 32>}, {pipeline_mode = #tpu.pipeline_mode<synchronous>, transform_indices = @transform_4, window_bounds = array<i64: 8, 32>}, {transform_indices = @transform_5, window_bounds = array<i64: 1, 128>}, {transform_indices = @transform_6, window_bounds = array<i64: 1, 128>}, {pipeline_mode = #tpu.pipeline_mode<synchronous>, transform_indices = @transform_7, window_bounds = array<i64: 1, 1>}, {pipeline_mode = #tpu.pipeline_mode<synchronous>, transform_indices = @transform_8, window_bounds = array<i64: 1, 1>}]} {
    %c0 = arith.constant 0 : index
    %c0_0 = arith.constant 0 : index
    %0 = vector.load %arg3[%c0, %c0_0] : memref<32x8xf32, #tpu.memory_space<vmem>>, vector<32x8xf32>
    %c0_1 = arith.constant 0 : index
    %c0_2 = arith.constant 0 : index
    %1 = vector.load %arg4[%c0_1, %c0_2] : memref<32x32xf32, #tpu.memory_space<vmem>>, vector<32x32xf32>
    %c0_3 = arith.constant 0 : index
    %c0_4 = arith.constant 0 : index
    %2 = vector.load %arg5[%c0_3, %c0_4] : memref<8x32xf32, #tpu.memory_space<vmem>>, vector<8x32xf32>
    %c128_i32 = arith.constant 128 : i32
    %3 = arith.muli %arg0, %c128_i32 : i32
    %4 = tpu.iota {dimensions = array<i32: 1>} : vector<1x128xi32>
    %5 = vector.broadcast %3 : i32 to vector<1x128xi32>
    %6 = arith.addi %5, %4 : vector<1x128xi32>
    %c64_i32 = arith.constant 64 : i32
    %7 = vector.broadcast %c64_i32 : i32 to vector<1x128xi32>
    %8 = arith.cmpi slt, %6, %7 : vector<1x128xi32>
    %c0_5 = arith.constant 0 : index
    %c0_6 = arith.constant 0 : index
    %9 = vector.load %arg1[%c0_5, %c0_6] : memref<1x128xf32, #tpu.memory_space<vmem>>, vector<1x128xf32>
    %10 = tpu.iota {dimensions = array<i32: 0>} : vector<8x128xi32>
    %11 = vector.shape_cast %9 : vector<1x128xf32> to vector<1x128xf32>
    %12 = vector.broadcast %11 : vector<1x128xf32> to vector<8x128xf32>
    %c1_i32 = arith.constant 1 : i32
    %13 = vector.broadcast %c1_i32 : i32 to vector<8x128xi32>
    %14 = arith.cmpi eq, %10, %13 : vector<8x128xi32>
    %cst = arith.constant 1.000000e+00 : f32
    %15 = vector.broadcast %cst : f32 to vector<8x128xf32>
    %16 = arith.select %14, %15, %12 : vector<8x128xi1>, vector<8x128xf32>
    %cst_7 = arith.constant dense<0.000000e+00> : vector<32x128xf32>
    %17 = tpu.matmul %0, %16, %cst_7 {dimension_numbers = #tpu.dot_dimension_numbers<[1], [0], [0], [1], [0, 0, 1, 1], [], []>} : vector<32x8xf32>, vector<8x128xf32>, vector<32x128xf32> -> vector<32x128xf32>
    %cst_8 = arith.constant 0.000000e+00 : f32
    %18 = vector.broadcast %cst_8 : f32 to vector<32x128xf32>
    %19 = arith.cmpf oge, %17, %18 : vector<32x128xf32>
    %cst_9 = arith.constant 0.00999999977 : f32
    %20 = vector.broadcast %cst_9 : f32 to vector<32x128xf32>
    %21 = arith.mulf %20, %17 : vector<32x128xf32>
    %22 = arith.select %19, %17, %21 : vector<32x128xi1>, vector<32x128xf32>
    %cst_10 = arith.constant dense<0.000000e+00> : vector<32x128xf32>
    %23 = tpu.matmul %1, %22, %cst_10 {dimension_numbers = #tpu.dot_dimension_numbers<[1], [0], [0], [1], [0, 0, 1, 1], [], []>} : vector<32x32xf32>, vector<32x128xf32>, vector<32x128xf32> -> vector<32x128xf32>
    %cst_11 = arith.constant 0.000000e+00 : f32
    %24 = vector.broadcast %cst_11 : f32 to vector<32x128xf32>
    %25 = arith.cmpf oge, %23, %24 : vector<32x128xf32>
    %cst_12 = arith.constant 0.00999999977 : f32
    %26 = vector.broadcast %cst_12 : f32 to vector<32x128xf32>
    %27 = arith.mulf %26, %23 : vector<32x128xf32>
    %28 = arith.select %25, %23, %27 : vector<32x128xi1>, vector<32x128xf32>
    %cst_13 = arith.constant dense<0.000000e+00> : vector<8x128xf32>
    %29 = tpu.matmul %2, %28, %cst_13 {dimension_numbers = #tpu.dot_dimension_numbers<[1], [0], [0], [1], [0, 0, 1, 1], [], []>} : vector<8x32xf32>, vector<32x128xf32>, vector<8x128xf32> -> vector<8x128xf32>
    %30 = vector.extract_strided_slice %29 {offsets = [0, 0], sizes = [1, 128], strides = [1, 1]} : vector<8x128xf32> to vector<1x128xf32>
    %cst_14 = arith.constant 0.000000e+00 : f32
    %31 = vector.broadcast %cst_14 : f32 to vector<1x128xf32>
    %32 = arith.select %8, %30, %31 : vector<1x128xi1>, vector<1x128xf32>
    %c64_i32_15 = arith.constant 64 : i32
    %33 = vector.broadcast %c64_i32_15 : i32 to vector<1x128xi32>
    %34 = arith.cmpi slt, %6, %33 : vector<1x128xi32>
    %c0_16 = arith.constant 0 : index
    %c0_17 = arith.constant 0 : index
    %35 = vector.load %arg2[%c0_16, %c0_17] : memref<1x128xf32, #tpu.memory_space<vmem>>, vector<1x128xf32>
    %36 = tpu.iota {dimensions = array<i32: 0>} : vector<8x128xi32>
    %37 = vector.shape_cast %35 : vector<1x128xf32> to vector<1x128xf32>
    %38 = vector.broadcast %37 : vector<1x128xf32> to vector<8x128xf32>
    %c1_i32_18 = arith.constant 1 : i32
    %39 = vector.broadcast %c1_i32_18 : i32 to vector<8x128xi32>
    %40 = arith.cmpi eq, %36, %39 : vector<8x128xi32>
    %cst_19 = arith.constant 1.000000e+00 : f32
    %41 = vector.broadcast %cst_19 : f32 to vector<8x128xf32>
    %42 = arith.select %40, %41, %38 : vector<8x128xi1>, vector<8x128xf32>
    %cst_20 = arith.constant dense<0.000000e+00> : vector<32x128xf32>
    %43 = tpu.matmul %0, %42, %cst_20 {dimension_numbers = #tpu.dot_dimension_numbers<[1], [0], [0], [1], [0, 0, 1, 1], [], []>} : vector<32x8xf32>, vector<8x128xf32>, vector<32x128xf32> -> vector<32x128xf32>
    %cst_21 = arith.constant 0.000000e+00 : f32
    %44 = vector.broadcast %cst_21 : f32 to vector<32x128xf32>
    %45 = arith.cmpf oge, %43, %44 : vector<32x128xf32>
    %cst_22 = arith.constant 0.00999999977 : f32
    %46 = vector.broadcast %cst_22 : f32 to vector<32x128xf32>
    %47 = arith.mulf %46, %43 : vector<32x128xf32>
    %48 = arith.select %45, %43, %47 : vector<32x128xi1>, vector<32x128xf32>
    %cst_23 = arith.constant dense<0.000000e+00> : vector<32x128xf32>
    %49 = tpu.matmul %1, %48, %cst_23 {dimension_numbers = #tpu.dot_dimension_numbers<[1], [0], [0], [1], [0, 0, 1, 1], [], []>} : vector<32x32xf32>, vector<32x128xf32>, vector<32x128xf32> -> vector<32x128xf32>
    %cst_24 = arith.constant 0.000000e+00 : f32
    %50 = vector.broadcast %cst_24 : f32 to vector<32x128xf32>
    %51 = arith.cmpf oge, %49, %50 : vector<32x128xf32>
    %cst_25 = arith.constant 0.00999999977 : f32
    %52 = vector.broadcast %cst_25 : f32 to vector<32x128xf32>
    %53 = arith.mulf %52, %49 : vector<32x128xf32>
    %54 = arith.select %51, %49, %53 : vector<32x128xi1>, vector<32x128xf32>
    %cst_26 = arith.constant dense<0.000000e+00> : vector<8x128xf32>
    %55 = tpu.matmul %2, %54, %cst_26 {dimension_numbers = #tpu.dot_dimension_numbers<[1], [0], [0], [1], [0, 0, 1, 1], [], []>} : vector<8x32xf32>, vector<32x128xf32>, vector<8x128xf32> -> vector<8x128xf32>
    %56 = vector.extract_strided_slice %55 {offsets = [0, 0], sizes = [1, 128], strides = [1, 1]} : vector<8x128xf32> to vector<1x128xf32>
    %cst_27 = arith.constant 0.000000e+00 : f32
    %57 = vector.broadcast %cst_27 : f32 to vector<1x128xf32>
    %58 = arith.select %34, %56, %57 : vector<1x128xi1>, vector<1x128xf32>
    %c0_28 = arith.constant 0 : index
    %c0_29 = arith.constant 0 : index
    %59 = vector.load %arg6[%c0_28, %c0_29] : memref<1x128xf32, #tpu.memory_space<vmem>>, vector<1x128xf32>
    tpu.vector_store %arg6[%c0_28, %c0_29], %32 {strides = array<i32>} : memref<1x128xf32, #tpu.memory_space<vmem>>, vector<1x128xf32>,
    %c0_30 = arith.constant 0 : index
    %c0_31 = arith.constant 0 : index
    %60 = vector.load %arg7[%c0_30, %c0_31] : memref<1x128xf32, #tpu.memory_space<vmem>>, vector<1x128xf32>
    tpu.vector_store %arg7[%c0_30, %c0_31], %58 {strides = array<i32>} : memref<1x128xf32, #tpu.memory_space<vmem>>, vector<1x128xf32>,
    %c0_i32 = arith.constant 0 : i32
    %61 = arith.cmpi eq, %arg0, %c0_i32 : i32
    %62 = arith.extui %61 : i1 to i32
    %c0_i32_32 = arith.constant 0 : i32
    %63 = arith.cmpi ne, %62, %c0_i32_32 : i32
    scf.if %63 {
      %cst_45 = arith.constant 0.000000e+00 : f32
      %84 = vector.broadcast %cst_45 : f32 to vector<1x1xf32>
      %c0_46 = arith.constant 0 : index
      %c0_47 = arith.constant 0 : index
      %85 = vector.load %arg8[%c0_46, %c0_47] : memref<1x1xf32, #tpu.memory_space<vmem>>, vector<1x1xf32>
      tpu.vector_store %arg8[%c0_46, %c0_47], %84 {strides = array<i32>} : memref<1x1xf32, #tpu.memory_space<vmem>>, vector<1x1xf32>,
      %cst_48 = arith.constant 0.000000e+00 : f32
      %86 = vector.broadcast %cst_48 : f32 to vector<1x1xf32>
      %c0_49 = arith.constant 0 : index
      %c0_50 = arith.constant 0 : index
      %87 = vector.load %arg9[%c0_49, %c0_50] : memref<1x1xf32, #tpu.memory_space<vmem>>, vector<1x1xf32>
      tpu.vector_store %arg9[%c0_49, %c0_50], %86 {strides = array<i32>} : memref<1x1xf32, #tpu.memory_space<vmem>>, vector<1x1xf32>,
    } else {
    }
    %c0_33 = arith.constant 0 : index
    %c0_34 = arith.constant 0 : index
    %64 = vector.load %arg8[%c0_33, %c0_34] : memref<1x1xf32, #tpu.memory_space<vmem>>, vector<1x1xf32>
    %65 = vector.shape_cast %32 : vector<1x128xf32> to vector<1x1x128xf32>
    %cst_35 = arith.constant dense<0.000000e+00> : vector<1xf32>
    %66 = vector.multi_reduction <add>, %65, %cst_35 [1, 2] : vector<1x1x128xf32> to vector<1xf32>
    %67 = vector.shape_cast %66 : vector<1xf32> to vector<1x1x1xf32>
    %68 = vector.extract %67[0, 0, 0] : f32 from vector<1x1x1xf32>
    %69 = vector.broadcast %68 : f32 to vector<1x1xf32>
    %cst_36 = arith.constant 1.562500e-02 : f32
    %70 = vector.broadcast %cst_36 : f32 to vector<1x1xf32>
    %71 = arith.mulf %69, %70 : vector<1x1xf32>
    %72 = arith.addf %64, %71 : vector<1x1xf32>
    %c0_37 = arith.constant 0 : index
    %c0_38 = arith.constant 0 : index
    %73 = vector.load %arg8[%c0_37, %c0_38] : memref<1x1xf32, #tpu.memory_space<vmem>>, vector<1x1xf32>
    tpu.vector_store %arg8[%c0_37, %c0_38], %72 {strides = array<i32>} : memref<1x1xf32, #tpu.memory_space<vmem>>, vector<1x1xf32>,
    %c0_39 = arith.constant 0 : index
    %c0_40 = arith.constant 0 : index
    %74 = vector.load %arg9[%c0_39, %c0_40] : memref<1x1xf32, #tpu.memory_space<vmem>>, vector<1x1xf32>
    %75 = vector.shape_cast %58 : vector<1x128xf32> to vector<1x1x128xf32>
    %cst_41 = arith.constant dense<0.000000e+00> : vector<1xf32>
    %76 = vector.multi_reduction <add>, %75, %cst_41 [1, 2] : vector<1x1x128xf32> to vector<1xf32>
    %77 = vector.shape_cast %76 : vector<1xf32> to vector<1x1x1xf32>
    %78 = vector.extract %77[0, 0, 0] : f32 from vector<1x1x1xf32>
    %79 = vector.broadcast %78 : f32 to vector<1x1xf32>
    %cst_42 = arith.constant 1.562500e-02 : f32
    %80 = vector.broadcast %cst_42 : f32 to vector<1x1xf32>
    %81 = arith.mulf %79, %80 : vector<1x1xf32>
    %82 = arith.addf %74, %81 : vector<1x1xf32>
    %c0_43 = arith.constant 0 : index
    %c0_44 = arith.constant 0 : index
    %83 = vector.load %arg9[%c0_43, %c0_44] : memref<1x1xf32, #tpu.memory_space<vmem>>, vector<1x1xf32>
    tpu.vector_store %arg9[%c0_43, %c0_44], %82 {strides = array<i32>} : memref<1x1xf32, #tpu.memory_space<vmem>>, vector<1x1xf32>,
    return
  }
  func.func @transform_0(%arg0: i32) -> (i32, i32) {
    %c0_i32 = arith.constant 0 : i32
    %c0_i32_0 = arith.constant 0 : i32
    return %c0_i32, %arg0 : i32, i32
  }
  func.func @transform_1(%arg0: i32) -> (i32, i32) {
    %c0_i32 = arith.constant 0 : i32
    %c0_i32_0 = arith.constant 0 : i32
    return %c0_i32, %arg0 : i32, i32
  }
  func.func @transform_2(%arg0: i32) -> (i32, i32) {
    %c0_i32 = arith.constant 0 : i32
    %c0_i32_0 = arith.constant 0 : i32
    %c0_i32_1 = arith.constant 0 : i32
    return %c0_i32, %c0_i32_0 : i32, i32
  }
  func.func @transform_3(%arg0: i32) -> (i32, i32) {
    %c0_i32 = arith.constant 0 : i32
    %c0_i32_0 = arith.constant 0 : i32
    %c0_i32_1 = arith.constant 0 : i32
    return %c0_i32, %c0_i32_0 : i32, i32
  }
  func.func @transform_4(%arg0: i32) -> (i32, i32) {
    %c0_i32 = arith.constant 0 : i32
    %c0_i32_0 = arith.constant 0 : i32
    %c0_i32_1 = arith.constant 0 : i32
    return %c0_i32, %c0_i32_0 : i32, i32
  }
  func.func @transform_5(%arg0: i32) -> (i32, i32) {
    %c0_i32 = arith.constant 0 : i32
    %c0_i32_0 = arith.constant 0 : i32
    return %c0_i32, %arg0 : i32, i32
  }
  func.func @transform_6(%arg0: i32) -> (i32, i32) {
    %c0_i32 = arith.constant 0 : i32
    %c0_i32_0 = arith.constant 0 : i32
    return %c0_i32, %arg0 : i32, i32
  }
  func.func @transform_7(%arg0: i32) -> (i32, i32) {
    %c0_i32 = arith.constant 0 : i32
    %c0_i32_0 = arith.constant 0 : i32
    %c0_i32_1 = arith.constant 0 : i32
    return %c0_i32, %c0_i32_0 : i32, i32
  }
  func.func @transform_8(%arg0: i32) -> (i32, i32) {
    %c0_i32 = arith.constant 0 : i32
    %c0_i32_0 = arith.constant 0 : i32
    %c0_i32_1 = arith.constant 0 : i32
    return %c0_i32, %c0_i32_0 : i32, i32
  }
}

</mosaic_0001>

<llo_original>
// kernel: adversarial_forward.1
$region0: #{adversarial_forward.1}
  #allocation0 [shape = 'u32[]', space=smem, size = 0x4, offset = 0x4, fixed_abs, tag = 'smem constant byte address 0x4 - core index']
  #allocation1 [shape = 'u32[144,128]{1,0:T(1,128)}', space=vmem, size = 0x12000, scoped, tag = 'internal scratch']
  %s0 = inlined_call_operand.vmem [shape: f32[1,128], index: 0, kind: input, shape index: {}]
  %s1 = inlined_call_operand.vmem [shape: f32[1,128], index: 1, kind: input, shape index: {}]
  %s2 = inlined_call_operand.vmem [shape: f32[32,8], index: 2, kind: input, shape index: {}]
  %s3 = inlined_call_operand.vmem [shape: f32[32,32], index: 3, kind: input, shape index: {}]
  %s4 = inlined_call_operand.vmem [shape: f32[8,32], index: 4, kind: input, shape index: {}]
  %s5 = inlined_call_operand.vmem [shape: f32[1,128], index: 5, kind: output, shape index: {0}]
  %s6 = inlined_call_operand.vmem [shape: f32[1,128], index: 6, kind: output, shape index: {1}]
  %s7 = inlined_call_operand.hbm [shape: f32[1,1], index: 7, kind: output, shape index: {2}]
  %s8 = inlined_call_operand.hbm [shape: f32[1,1], index: 8, kind: output, shape index: {3}]
  %9 = xla_tuple %s5, %s6, %s7, %s8
  %s10 = sld [smem:[#allocation0]]
  $region58: #{adversarial_forward.1} parent=0
    _
  %s12 = ssub.s32 1, %s10
  %s13 = scalar_select 0, %s12, %s10
  $region1: #{adversarial_forward.1} parent=0
    #allocation2 [shape = 'u8[512]{0}', space=vmem, size = 0x400, scoped, tag = 'output window, operand 2, single buffered']
    #allocation3 [shape = 's32[1]{0}', space=sflag, size = 0x4, scoped, tag = 'scoped memory for adversarial_forward.1']
    #allocation4 [shape = 'u8[512]{0}', space=vmem, size = 0x400, scoped, tag = 'output window, operand 3, single buffered']
    #allocation5 [shape = 's32[1]{0}', space=sflag, size = 0x4, scoped, tag = 'scoped memory for adversarial_forward.1']
    %14 = vsyncpa [#allocation3], 0
    %15 = vsyncpa [#allocation5], 0
    // Predicated region
    $region2: #{adversarial_forward.1} parent=1 // pred_check
      _
    $region3: #{adversarial_forward.1} parent=1 // pred_check_branch
      %17 = sbr.rel (0) target = $region5
    $region4: #{adversarial_forward.1} parent=1 // pred_region
      _
    $region5: #{adversarial_forward.1} parent=1 // pred_fallthru
      _
    // Predicated region
    $region6: #{adversarial_forward.1} parent=1 // pred_check
      _
    $region7: #{adversarial_forward.1} parent=1 // pred_check_branch
      %19 = sbr.rel (0) target = $region9
    $region8: #{adversarial_forward.1} parent=1 // pred_region
      _
    $region9: #{adversarial_forward.1} parent=1 // pred_fallthru
      _
    // Predicated region
    $region10: #{adversarial_forward.1} parent=1 // pred_check
      _
    $region11: #{adversarial_forward.1} parent=1 // pred_check_branch
      %21 = sbr.rel (0) target = $region13
    $region12: #{adversarial_forward.1} parent=1 // pred_region
      _
    $region13: #{adversarial_forward.1} parent=1 // pred_fallthru
      _
    // Predicated region
    $region14: #{adversarial_forward.1} parent=1 // pred_check
      _
    $region15: #{adversarial_forward.1} parent=1 // pred_check_branch
      %23 = sbr.rel (0) target = $region17
    $region16: #{adversarial_forward.1} parent=1 // pred_region
      _
    $region17: #{adversarial_forward.1} parent=1 // pred_fallthru
      _
    // Predicated region
    $region18: #{adversarial_forward.1} parent=1 // pred_check
      _
    $region19: #{adversarial_forward.1} parent=1 // pred_check_branch
      %25 = sbr.rel (0) target = $region21
    $region20: #{adversarial_forward.1} parent=1 // pred_region
      _
    $region21: #{adversarial_forward.1} parent=1 // pred_fallthru
      _
    %v26 = vld [vmem:[%s2] sm:$0xff]
    %v27 = vld [vmem:[%s2 + $0x8] sm:$0xff]
    %v28 = vld [vmem:[%s2 + $0x10] sm:$0xff]
    %v29 = vld [vmem:[%s2 + $0x18] sm:$0xff]
    %v30 = vld [vmem:[%s3] sm:$0xff]
    %v31 = vld [vmem:[%s3 + $0x8] sm:$0xff]
    %v32 = vld [vmem:[%s3 + $0x10] sm:$0xff]
    %v33 = vld [vmem:[%s3 + $0x18] sm:$0xff]
    %v34 = vld [vmem:[%s4] sm:$0xff]
    %s35 = smul.u32 0, 128
    %v36 = vlaneseq
    %v37 = vand.u32 %v36, 127
    %v38 = vstv %s35
    %v39 = vadd.s32 %v38, %v37
    %vm40 = vcmp.lt.s32.totalorder %v39, 64
    %v41 = vld [vmem:[%s0] sm:$0x1]
    %v42 = vlaneseq
    %v43 = vshrl.u32 %v42, 7
    %v45 = vlaneseq
    %v46 = vshrl.u32 %v45, 7
    %v47 = vsub.s32 0, %v46
    %v48 = vrot.slane %v41, %v47
    %vm50 = vcmp.eq.s32.totalorder %v43, 1
    %v51 = vsel %vm50, 1.0, %v48
    %vm52 = vcmask 64512
    %v54 = vsel %vm52, %v26, 0
    %v57 = vsel %vm52, %v27, 0
    %v60 = vsel %vm52, %v28, 0
    %v63 = vsel %vm52, %v29, 0
    %65 = vmatprep.subr.mxu0 0.0
    %66 = vmatpush1.msra.mxu0 %v51
    %67 = vmatprep.subr.mxu0 0.0
    %68 = vmatpush1.msra.mxu0 0.0
    %69 = vmatprep.subr.mxu0 0.0
    %70 = vmatpush1.msra.mxu0 0.0
    %71 = vmatprep.subr.mxu0 0.0
    %72 = vmatpush1.msra.mxu0 0.0
    %73 = vmatprep.subr.mxu0 0.0
    %74 = vmatpush1.msra.mxu0 0.0
    %75 = vmatprep.subr.mxu0 0.0
    %76 = vmatpush1.msra.mxu0 0.0
    %77 = vmatprep.subr.mxu0 0.0
    %78 = vmatpush1.msra.mxu0 0.0
    %79 = vmatprep.subr.mxu0 0.0
    %80 = vmatpush1.msra.mxu0 0.0
    %81 = vmatprep.subr.mxu0 0.0
    %82 = vmatpush1.msra.mxu0 0.0
    %83 = vmatprep.subr.mxu0 0.0
    %84 = vmatpush1.msra.mxu0 0.0
    %85 = vmatprep.subr.mxu0 0.0
    %86 = vmatpush1.msra.mxu0 0.0
    %87 = vmatprep.subr.mxu0 0.0
    %88 = vmatpush1.msra.mxu0 0.0
    %89 = vmatprep.subr.mxu0 0.0
    %90 = vmatpush1.msra.mxu0 0.0
    %91 = vmatprep.subr.mxu0 0.0
    %92 = vmatpush1.msra.mxu0 0.0
    %93 = vmatprep.subr.mxu0 0.0
    %94 = vmatpush1.msra.mxu0 0.0
    %95 = vmatprep.subr.mxu0 0.0
    %96 = vmatpush1.msra.mxu0 0.0
    %97 = vmatprep.subr.mxu0 0.0
    %98 = vmatpush1.msra.mxu0 0.0
    %99 = vmatprep.subr.mxu0 0.0
    %100 = vmatpush1.msra.mxu0 0.0
    %101 = vmatprep.subr.mxu0 0.0
    %102 = vmatpush1.msra.mxu0 0.0
    %103 = vmatprep.subr.mxu0 0.0
    %104 = vmatpush1.msra.mxu0 0.0
    %105 = vmatprep.subr.mxu0 0.0
    %106 = vmatpush1.msra.mxu0 0.0
    %107 = vmatprep.subr.mxu0 0.0
    %108 = vmatpush1.msra.mxu0 0.0
    %109 = vmatprep.subr.mxu0 0.0
    %110 = vmatpush1.msra.mxu0 0.0
    %111 = vmatprep.subr.mxu0 0.0
    %112 = vmatpush1.msra.mxu0 0.0
    %113 = vmatprep.subr.mxu0 0.0
    %114 = vmatpush1.msra.mxu0 0.0
    %115 = vmatprep.subr.mxu0 0.0
    %116 = vmatpush1.msra.mxu0 0.0
    %117 = vmatprep.subr.mxu0 0.0
    %118 = vmatpush1.msra.mxu0 0.0
    %119 = vmatprep.subr.mxu0 0.0
    %120 = vmatpush1.msra.mxu0 0.0
    %121 = vmatprep.subr.mxu0 0.0
    %122 = vmatpush1.msra.mxu0 0.0
    %123 = vmatprep.subr.mxu0 0.0
    %124 = vmatpush1.msra.mxu0 0.0
    %125 = vmatprep.subr.mxu0 0.0
    %126 = vmatpush1.msra.mxu0 0.0
    %127 = vmatprep.subr.mxu0 0.0
    %128 = vmatpush1.msra.mxu0 0.0
    %129 = vmatprep.mubr.f32.mxu0 0.0
    %130 = vmatmul.mubr.f32.gmra.mrb[0].mxu0 %v54
    %v131 = vpop.f32.mrb[0].mxu0
    %v132 = vadd.f32 0.0, %v131
    %v133 = vpop.f32.mrb[0].mxu0
    %134 = vmatprep.mubr.f32.mxu0 0.0
    %135 = vmatmul.mubr.f32.gmra.mrb[0].mxu0 %v57
    %v136 = vpop.f32.mrb[0].mxu0
    %v137 = vadd.f32 0.0, %v136
    %v138 = vpop.f32.mrb[0].mxu0
    %139 = vmatprep.mubr.f32.mxu0 0.0
    %140 = vmatmul.mubr.f32.gmra.mrb[0].mxu0 %v60
    %v141 = vpop.f32.mrb[0].mxu0
    %v142 = vadd.f32 0.0, %v141
    %v143 = vpop.f32.mrb[0].mxu0
    %144 = vmatprep.mubr.f32.mxu0 0.0
    %145 = vmatmul.mubr.f32.gmra.mrb[0].mxu0 %v63
    %v146 = vpop.f32.mrb[0].mxu0
    %v147 = vadd.f32 0.0, %v146
    %v148 = vpop.f32.mrb[0].mxu0
    %149 = vdwg.mxu0
    %vm150 = vcmp.ge.f32.partialorder %v132, 0.0
    %vm151 = vcmp.ge.f32.partialorder %v137, 0.0
    %vm152 = vcmp.ge.f32.partialorder %v142, 0.0
    %vm153 = vcmp.ge.f32.partialorder %v147, 0.0
    %v154 = vmul.f32 %v132, 0.01
    %v155 = vmul.f32 %v137, 0.01
    %v156 = vmul.f32 %v142, 0.01
    %v157 = vmul.f32 %v147, 0.01
    %v158 = vsel %vm150, %v132, %v154
    %v159 = vsel %vm151, %v137, %v155
    %v160 = vsel %vm152, %v142, %v156
    %v161 = vsel %vm153, %v147, %v157
    %vm162 = vcmask 261120
    %v164 = vsel %vm162, %v30, 0
    %v167 = vsel %vm162, %v31, 0
    %v170 = vsel %vm162, %v32, 0
    %v173 = vsel %vm162, %v33, 0
    %175 = vmatprep.subr.mxu0 0.0
    %176 = vmatpush1.msra.mxu0 %v158
    %177 = vmatprep.subr.mxu0 0.0
    %178 = vmatpush1.msra.mxu0 %v159
    %179 = vmatprep.subr.mxu0 0.0
    %180 = vmatpush1.msra.mxu0 %v160
    %181 = vmatprep.subr.mxu0 0.0
    %182 = vmatpush1.msra.mxu0 %v161
    %183 = vmatprep.subr.mxu0 0.0
    %184 = vmatpush1.msra.mxu0 0.0
    %185 = vmatprep.subr.mxu0 0.0
    %186 = vmatpush1.msra.mxu0 0.0
    %187 = vmatprep.subr.mxu0 0.0
    %188 = vmatpush1.msra.mxu0 0.0
    %189 = vmatprep.subr.mxu0 0.0
    %190 = vmatpush1.msra.mxu0 0.0
    %191 = vmatprep.subr.mxu0 0.0
    %192 = vmatpush1.msra.mxu0 0.0
    %193 = vmatprep.subr.mxu0 0.0
    %194 = vmatpush1.msra.mxu0 0.0
    %195 = vmatprep.subr.mxu0 0.0
    %196 = vmatpush1.msra.mxu0 0.0
    %197 = vmatprep.subr.mxu0 0.0
    %198 = vmatpush1.msra.mxu0 0.0
    %199 = vmatprep.subr.mxu0 0.0
    %200 = vmatpush1.msra.mxu0 0.0
    %201 = vmatprep.subr.mxu0 0.0
    %202 = vmatpush1.msra.mxu0 0.0
    %203 = vmatprep.subr.mxu0 0.0
    %204 = vmatpush1.msra.mxu0 0.0
    %205 = vmatprep.subr.mxu0 0.0
    %206 = vmatpush1.msra.mxu0 0.0
    %207 = vmatprep.subr.mxu0 0.0
    %208 = vmatpush1.msra.mxu0 0.0
    %209 = vmatprep.subr.mxu0 0.0
    %210 = vmatpush1.msra.mxu0 0.0
    %211 = vmatprep.subr.mxu0 0.0
    %212 = vmatpush1.msra.mxu0 0.0
    %213 = vmatprep.subr.mxu0 0.0
    %214 = vmatpush1.msra.mxu0 0.0
    %215 = vmatprep.subr.mxu0 0.0
    %216 = vmatpush1.msra.mxu0 0.0
    %217 = vmatprep.subr.mxu0 0.0
    %218 = vmatpush1.msra.mxu0 0.0
    %219 = vmatprep.subr.mxu0 0.0
    %220 = vmatpush1.msra.mxu0 0.0
    %221 = vmatprep.subr.mxu0 0.0
    %222 = vmatpush1.msra.mxu0 0.0
    %223 = vmatprep.subr.mxu0 0.0
    %224 = vmatpush1.msra.mxu0 0.0
    %225 = vmatprep.subr.mxu0 0.0
    %226 = vmatpush1.msra.mxu0 0.0
    %227 = vmatprep.subr.mxu0 0.0
    %228 = vmatpush1.msra.mxu0 0.0
    %229 = vmatprep.subr.mxu0 0.0
    %230 = vmatpush1.msra.mxu0 0.0
    %231 = vmatprep.subr.mxu0 0.0
    %232 = vmatpush1.msra.mxu0 0.0
    %233 = vmatprep.subr.mxu0 0.0
    %234 = vmatpush1.msra.mxu0 0.0
    %235 = vmatprep.subr.mxu0 0.0
    %236 = vmatpush1.msra.mxu0 0.0
    %237 = vmatprep.subr.mxu0 0.0
    %238 = vmatpush1.msra.mxu0 0.0
    %239 = vmatprep.mubr.f32.mxu0 0.0
    %240 = vmatmul.mubr.f32.gmra.mrb[0].mxu0 %v164
    %v241 = vpop.f32.mrb[0].mxu0
    %v242 = vadd.f32 0.0, %v241
    %v243 = vpop.f32.mrb[0].mxu0
    %244 = vmatprep.mubr.f32.mxu0 0.0
    %245 = vmatmul.mubr.f32.gmra.mrb[0].mxu0 %v167
    %v246 = vpop.f32.mrb[0].mxu0
    %v247 = vadd.f32 0.0, %v246
    %v248 = vpop.f32.mrb[0].mxu0
    %249 = vmatprep.mubr.f32.mxu0 0.0
    %250 = vmatmul.mubr.f32.gmra.mrb[0].mxu0 %v170
    %v251 = vpop.f32.mrb[0].mxu0
    %v252 = vadd.f32 0.0, %v251
    %v253 = vpop.f32.mrb[0].mxu0
    %254 = vmatprep.mubr.f32.mxu0 0.0
    %255 = vmatmul.mubr.f32.gmra.mrb[0].mxu0 %v173
    %v256 = vpop.f32.mrb[0].mxu0
    %v257 = vadd.f32 0.0, %v256
    %v258 = vpop.f32.mrb[0].mxu0
    %259 = vdwg.mxu0
    %vm260 = vcmp.ge.f32.partialorder %v242, 0.0
    %vm261 = vcmp.ge.f32.partialorder %v247, 0.0
    %vm262 = vcmp.ge.f32.partialorder %v252, 0.0
    %vm263 = vcmp.ge.f32.partialorder %v257, 0.0
    %v264 = vmul.f32 %v242, 0.01
    %v265 = vmul.f32 %v247, 0.01
    %v266 = vmul.f32 %v252, 0.01
    %v267 = vmul.f32 %v257, 0.01
    %v268 = vsel %vm260, %v242, %v264
    %v269 = vsel %vm261, %v247, %v265
    %v270 = vsel %vm262, %v252, %v266
    %v271 = vsel %vm263, %v257, %v267
    %v273 = vsel %vm162, %v34, 0
    %275 = vmatprep.subr.mxu0 0.0
    %276 = vmatpush1.msra.mxu0 %v268
    %277 = vmatprep.subr.mxu0 0.0
    %278 = vmatpush1.msra.mxu0 %v269
    %279 = vmatprep.subr.mxu0 0.0
    %280 = vmatpush1.msra.mxu0 %v270
    %281 = vmatprep.subr.mxu0 0.0
    %282 = vmatpush1.msra.mxu0 %v271
    %283 = vmatprep.subr.mxu0 0.0
    %284 = vmatpush1.msra.mxu0 0.0
    %285 = vmatprep.subr.mxu0 0.0
    %286 = vmatpush1.msra.mxu0 0.0
    %287 = vmatprep.subr.mxu0 0.0
    %288 = vmatpush1.msra.mxu0 0.0
    %289 = vmatprep.subr.mxu0 0.0
    %290 = vmatpush1.msra.mxu0 0.0
    %291 = vmatprep.subr.mxu0 0.0
    %292 = vmatpush1.msra.mxu0 0.0
    %293 = vmatprep.subr.mxu0 0.0
    %294 = vmatpush1.msra.mxu0 0.0
    %295 = vmatprep.subr.mxu0 0.0
    %296 = vmatpush1.msra.mxu0 0.0
    %297 = vmatprep.subr.mxu0 0.0
    %298 = vmatpush1.msra.mxu0 0.0
    %299 = vmatprep.subr.mxu0 0.0
    %300 = vmatpush1.msra.mxu0 0.0
    %301 = vmatprep.subr.mxu0 0.0
    %302 = vmatpush1.msra.mxu0 0.0
    %303 = vmatprep.subr.mxu0 0.0
    %304 = vmatpush1.msra.mxu0 0.0
    %305 = vmatprep.subr.mxu0 0.0
    %306 = vmatpush1.msra.mxu0 0.0
    %307 = vmatprep.subr.mxu0 0.0
    %308 = vmatpush1.msra.mxu0 0.0
    %309 = vmatprep.subr.mxu0 0.0
    %310 = vmatpush1.msra.mxu0 0.0
    %311 = vmatprep.subr.mxu0 0.0
    %312 = vmatpush1.msra.mxu0 0.0
    %313 = vmatprep.subr.mxu0 0.0
    %314 = vmatpush1.msra.mxu0 0.0
    %315 = vmatprep.subr.mxu0 0.0
    %316 = vmatpush1.msra.mxu0 0.0
    %317 = vmatprep.subr.mxu0 0.0
    %318 = vmatpush1.msra.mxu0 0.0
    %319 = vmatprep.subr.mxu0 0.0
    %320 = vmatpush1.msra.mxu0 0.0
    %321 = vmatprep.subr.mxu0 0.0
    %322 = vmatpush1.msra.mxu0 0.0
    %323 = vmatprep.subr.mxu0 0.0
    %324 = vmatpush1.msra.mxu0 0.0
    %325 = vmatprep.subr.mxu0 0.0
    %326 = vmatpush1.msra.mxu0 0.0
    %327 = vmatprep.subr.mxu0 0.0
    %328 = vmatpush1.msra.mxu0 0.0
    %329 = vmatprep.subr.mxu0 0.0
    %330 = vmatpush1.msra.mxu0 0.0
    %331 = vmatprep.subr.mxu0 0.0
    %332 = vmatpush1.msra.mxu0 0.0
    %333 = vmatprep.subr.mxu0 0.0
    %334 = vmatpush1.msra.mxu0 0.0
    %335 = vmatprep.subr.mxu0 0.0
    %336 = vmatpush1.msra.mxu0 0.0
    %337 = vmatprep.subr.mxu0 0.0
    %338 = vmatpush1.msra.mxu0 0.0
    %339 = vmatprep.mubr.f32.mxu0 0.0
    %340 = vmatmul.mubr.f32.gmra.mrb[0].mxu0 %v273
    %v341 = vpop.f32.mrb[0].mxu0
    %v342 = vadd.f32 0.0, %v341
    %v343 = vpop.f32.mrb[0].mxu0
    %344 = vdwg.mxu0
    %v345 = vsel %vm40, %v342, 0.0
    %v346 = vld [vmem:[%s1] sm:$0x1]
    %v348 = vlaneseq
    %v349 = vshrl.u32 %v348, 7
    %v350 = vsub.s32 0, %v349
    %v351 = vrot.slane %v346, %v350
    %v353 = vsel %vm50, 1.0, %v351
    %354 = vmatprep.subr.mxu0 0.0
    %355 = vmatpush1.msra.mxu0 %v353
    %356 = vmatprep.subr.mxu0 0.0
    %357 = vmatpush1.msra.mxu0 0.0
    %358 = vmatprep.subr.mxu0 0.0
    %359 = vmatpush1.msra.mxu0 0.0
    %360 = vmatprep.subr.mxu0 0.0
    %361 = vmatpush1.msra.mxu0 0.0
    %362 = vmatprep.subr.mxu0 0.0
    %363 = vmatpush1.msra.mxu0 0.0
    %364 = vmatprep.subr.mxu0 0.0
    %365 = vmatpush1.msra.mxu0 0.0
    %366 = vmatprep.subr.mxu0 0.0
    %367 = vmatpush1.msra.mxu0 0.0
    %368 = vmatprep.subr.mxu0 0.0
    %369 = vmatpush1.msra.mxu0 0.0
    %370 = vmatprep.subr.mxu0 0.0
    %371 = vmatpush1.msra.mxu0 0.0
    %372 = vmatprep.subr.mxu0 0.0
    %373 = vmatpush1.msra.mxu0 0.0
    %374 = vmatprep.subr.mxu0 0.0
    %375 = vmatpush1.msra.mxu0 0.0
    %376 = vmatprep.subr.mxu0 0.0
    %377 = vmatpush1.msra.mxu0 0.0
    %378 = vmatprep.subr.mxu0 0.0
    %379 = vmatpush1.msra.mxu0 0.0
    %380 = vmatprep.subr.mxu0 0.0
    %381 = vmatpush1.msra.mxu0 0.0
    %382 = vmatprep.subr.mxu0 0.0
    %383 = vmatpush1.msra.mxu0 0.0
    %384 = vmatprep.subr.mxu0 0.0
    %385 = vmatpush1.msra.mxu0 0.0
    %386 = vmatprep.subr.mxu0 0.0
    %387 = vmatpush1.msra.mxu0 0.0
    %388 = vmatprep.subr.mxu0 0.0
    %389 = vmatpush1.msra.mxu0 0.0
    %390 = vmatprep.subr.mxu0 0.0
    %391 = vmatpush1.msra.mxu0 0.0
    %392 = vmatprep.subr.mxu0 0.0
    %393 = vmatpush1.msra.mxu0 0.0
    %394 = vmatprep.subr.mxu0 0.0
    %395 = vmatpush1.msra.mxu0 0.0
    %396 = vmatprep.subr.mxu0 0.0
    %397 = vmatpush1.msra.mxu0 0.0
    %398 = vmatprep.subr.mxu0 0.0
    %399 = vmatpush1.msra.mxu0 0.0
    %400 = vmatprep.subr.mxu0 0.0
    %401 = vmatpush1.msra.mxu0 0.0
    %402 = vmatprep.subr.mxu0 0.0
    %403 = vmatpush1.msra.mxu0 0.0
    %404 = vmatprep.subr.mxu0 0.0
    %405 = vmatpush1.msra.mxu0 0.0
    %406 = vmatprep.subr.mxu0 0.0
    %407 = vmatpush1.msra.mxu0 0.0
    %408 = vmatprep.subr.mxu0 0.0
    %409 = vmatpush1.msra.mxu0 0.0
    %410 = vmatprep.subr.mxu0 0.0
    %411 = vmatpush1.msra.mxu0 0.0
    %412 = vmatprep.subr.mxu0 0.0
    %413 = vmatpush1.msra.mxu0 0.0
    %414 = vmatprep.subr.mxu0 0.0
    %415 = vmatpush1.msra.mxu0 0.0
    %416 = vmatprep.subr.mxu0 0.0
    %417 = vmatpush1.msra.mxu0 0.0
    %418 = vmatprep.mubr.f32.mxu0 0.0
    %419 = vmatmul.mubr.f32.gmra.mrb[0].mxu0 %v54
    %v420 = vpop.f32.mrb[0].mxu0
    %v421 = vadd.f32 0.0, %v420
    %v422 = vpop.f32.mrb[0].mxu0
    %423 = vmatprep.mubr.f32.mxu0 0.0
    %424 = vmatmul.mubr.f32.gmra.mrb[0].mxu0 %v57
    %v425 = vpop.f32.mrb[0].mxu0
    %v426 = vadd.f32 0.0, %v425
    %v427 = vpop.f32.mrb[0].mxu0
    %428 = vmatprep.mubr.f32.mxu0 0.0
    %429 = vmatmul.mubr.f32.gmra.mrb[0].mxu0 %v60
    %v430 = vpop.f32.mrb[0].mxu0
    %v431 = vadd.f32 0.0, %v430
    %v432 = vpop.f32.mrb[0].mxu0
    %433 = vmatprep.mubr.f32.mxu0 0.0
    %434 = vmatmul.mubr.f32.gmra.mrb[0].mxu0 %v63
    %v435 = vpop.f32.mrb[0].mxu0
    %v436 = vadd.f32 0.0, %v435
    %v437 = vpop.f32.mrb[0].mxu0
    %438 = vdwg.mxu0
    %vm439 = vcmp.ge.f32.partialorder %v421, 0.0
    %vm440 = vcmp.ge.f32.partialorder %v426, 0.0
    %vm441 = vcmp.ge.f32.partialorder %v431, 0.0
    %vm442 = vcmp.ge.f32.partialorder %v436, 0.0
    %v443 = vmul.f32 %v421, 0.01
    %v444 = vmul.f32 %v426, 0.01
    %v445 = vmul.f32 %v431, 0.01
    %v446 = vmul.f32 %v436, 0.01
    %v447 = vsel %vm439, %v421, %v443
    %v448 = vsel %vm440, %v426, %v444
    %v449 = vsel %vm441, %v431, %v445
    %v450 = vsel %vm442, %v436, %v446
    %451 = vmatprep.subr.mxu0 0.0
    %452 = vmatpush1.msra.mxu0 %v447
    %453 = vmatprep.subr.mxu0 0.0
    %454 = vmatpush1.msra.mxu0 %v448
    %455 = vmatprep.subr.mxu0 0.0
    %456 = vmatpush1.msra.mxu0 %v449
    %457 = vmatprep.subr.mxu0 0.0
    %458 = vmatpush1.msra.mxu0 %v450
    %459 = vmatprep.subr.mxu0 0.0
    %460 = vmatpush1.msra.mxu0 0.0
    %461 = vmatprep.subr.mxu0 0.0
    %462 = vmatpush1.msra.mxu0 0.0
    %463 = vmatprep.subr.mxu0 0.0
    %464 = vmatpush1.msra.mxu0 0.0
    %465 = vmatprep.subr.mxu0 0.0
    %466 = vmatpush1.msra.mxu0 0.0
    %467 = vmatprep.subr.mxu0 0.0
    %468 = vmatpush1.msra.mxu0 0.0
    %469 = vmatprep.subr.mxu0 0.0
    %470 = vmatpush1.msra.mxu0 0.0
    %471 = vmatprep.subr.mxu0 0.0
    %472 = vmatpush1.msra.mxu0 0.0
    %473 = vmatprep.subr.mxu0 0.0
    %474 = vmatpush1.msra.mxu0 0.0
    %475 = vmatprep.subr.mxu0 0.0
    %476 = vmatpush1.msra.mxu0 0.0
    %477 = vmatprep.subr.mxu0 0.0
    %478 = vmatpush1.msra.mxu0 0.0
    %479 = vmatprep.subr.mxu0 0.0
    %480 = vmatpush1.msra.mxu0 0.0
    %481 = vmatprep.subr.mxu0 0.0
    %482 = vmatpush1.msra.mxu0 0.0
    %483 = vmatprep.subr.mxu0 0.0
    %484 = vmatpush1.msra.mxu0 0.0
    %485 = vmatprep.subr.mxu0 0.0
    %486 = vmatpush1.msra.mxu0 0.0
    %487 = vmatprep.subr.mxu0 0.0
    %488 = vmatpush1.msra.mxu0 0.0
    %489 = vmatprep.subr.mxu0 0.0
    %490 = vmatpush1.msra.mxu0 0.0
    %491 = vmatprep.subr.mxu0 0.0
    %492 = vmatpush1.msra.mxu0 0.0
    %493 = vmatprep.subr.mxu0 0.0
    %494 = vmatpush1.msra.mxu0 0.0
    %495 = vmatprep.subr.mxu0 0.0
    %496 = vmatpush1.msra.mxu0 0.0
    %497 = vmatprep.subr.mxu0 0.0
    %498 = vmatpush1.msra.mxu0 0.0
    %499 = vmatprep.subr.mxu0 0.0
    %500 = vmatpush1.msra.mxu0 0.0
    %501 = vmatprep.subr.mxu0 0.0
    %502 = vmatpush1.msra.mxu0 0.0
    %503 = vmatprep.subr.mxu0 0.0
    %504 = vmatpush1.msra.mxu0 0.0
    %505 = vmatprep.subr.mxu0 0.0
    %506 = vmatpush1.msra.mxu0 0.0
    %507 = vmatprep.subr.mxu0 0.0
    %508 = vmatpush1.msra.mxu0 0.0
    %509 = vmatprep.subr.mxu0 0.0
    %510 = vmatpush1.msra.mxu0 0.0
    %511 = vmatprep.subr.mxu0 0.0
    %512 = vmatpush1.msra.mxu0 0.0
    %513 = vmatprep.subr.mxu0 0.0
    %514 = vmatpush1.msra.mxu0 0.0
    %515 = vmatprep.mubr.f32.mxu0 0.0
    %516 = vmatmul.mubr.f32.gmra.mrb[0].mxu0 %v164
    %v517 = vpop.f32.mrb[0].mxu0
    %v518 = vadd.f32 0.0, %v517
    %v519 = vpop.f32.mrb[0].mxu0
    %520 = vmatprep.mubr.f32.mxu0 0.0
    %521 = vmatmul.mubr.f32.gmra.mrb[0].mxu0 %v167
    %v522 = vpop.f32.mrb[0].mxu0
    %v523 = vadd.f32 0.0, %v522
    %v524 = vpop.f32.mrb[0].mxu0
    %525 = vmatprep.mubr.f32.mxu0 0.0
    %526 = vmatmul.mubr.f32.gmra.mrb[0].mxu0 %v170
    %v527 = vpop.f32.mrb[0].mxu0
    %v528 = vadd.f32 0.0, %v527
    %v529 = vpop.f32.mrb[0].mxu0
    %530 = vmatprep.mubr.f32.mxu0 0.0
    %531 = vmatmul.mubr.f32.gmra.mrb[0].mxu0 %v173
    %v532 = vpop.f32.mrb[0].mxu0
    %v533 = vadd.f32 0.0, %v532
    %v534 = vpop.f32.mrb[0].mxu0
    %535 = vdwg.mxu0
    %vm536 = vcmp.ge.f32.partialorder %v518, 0.0
    %vm537 = vcmp.ge.f32.partialorder %v523, 0.0
    %vm538 = vcmp.ge.f32.partialorder %v528, 0.0
    %vm539 = vcmp.ge.f32.partialorder %v533, 0.0
    %v540 = vmul.f32 %v518, 0.01
    %v541 = vmul.f32 %v523, 0.01
    %v542 = vmul.f32 %v528, 0.01
    %v543 = vmul.f32 %v533, 0.01
    %v544 = vsel %vm536, %v518, %v540
    %v545 = vsel %vm537, %v523, %v541
    %v546 = vsel %vm538, %v528, %v542
    %v547 = vsel %vm539, %v533, %v543
    %548 = vmatprep.subr.mxu0 0.0
    %549 = vmatpush1.msra.mxu0 %v544
    %550 = vmatprep.subr.mxu0 0.0
    %551 = vmatpush1.msra.mxu0 %v545
    %552 = vmatprep.subr.mxu0 0.0
    %553 = vmatpush1.msra.mxu0 %v546
    %554 = vmatprep.subr.mxu0 0.0
    %555 = vmatpush1.msra.mxu0 %v547
    %556 = vmatprep.subr.mxu0 0.0
    %557 = vmatpush1.msra.mxu0 0.0
    %558 = vmatprep.subr.mxu0 0.0
    %559 = vmatpush1.msra.mxu0 0.0
    %560 = vmatprep.subr.mxu0 0.0
    %561 = vmatpush1.msra.mxu0 0.0
    %562 = vmatprep.subr.mxu0 0.0
    %563 = vmatpush1.msra.mxu0 0.0
    %564 = vmatprep.subr.mxu0 0.0
    %565 = vmatpush1.msra.mxu0 0.0
    %566 = vmatprep.subr.mxu0 0.0
    %567 = vmatpush1.msra.mxu0 0.0
    %568 = vmatprep.subr.mxu0 0.0
    %569 = vmatpush1.msra.mxu0 0.0
    %570 = vmatprep.subr.mxu0 0.0
    %571 = vmatpush1.msra.mxu0 0.0
    %572 = vmatprep.subr.mxu0 0.0
    %573 = vmatpush1.msra.mxu0 0.0
    %574 = vmatprep.subr.mxu0 0.0
    %575 = vmatpush1.msra.mxu0 0.0
    %576 = vmatprep.subr.mxu0 0.0
    %577 = vmatpush1.msra.mxu0 0.0
    %578 = vmatprep.subr.mxu0 0.0
    %579 = vmatpush1.msra.mxu0 0.0
    %580 = vmatprep.subr.mxu0 0.0
    %581 = vmatpush1.msra.mxu0 0.0
    %582 = vmatprep.subr.mxu0 0.0
    %583 = vmatpush1.msra.mxu0 0.0
    %584 = vmatprep.subr.mxu0 0.0
    %585 = vmatpush1.msra.mxu0 0.0
    %586 = vmatprep.subr.mxu0 0.0
    %587 = vmatpush1.msra.mxu0 0.0
    %588 = vmatprep.subr.mxu0 0.0
    %589 = vmatpush1.msra.mxu0 0.0
    %590 = vmatprep.subr.mxu0 0.0
    %591 = vmatpush1.msra.mxu0 0.0
    %592 = vmatprep.subr.mxu0 0.0
    %593 = vmatpush1.msra.mxu0 0.0
    %594 = vmatprep.subr.mxu0 0.0
    %595 = vmatpush1.msra.mxu0 0.0
    %596 = vmatprep.subr.mxu0 0.0
    %597 = vmatpush1.msra.mxu0 0.0
    %598 = vmatprep.subr.mxu0 0.0
    %599 = vmatpush1.msra.mxu0 0.0
    %600 = vmatprep.subr.mxu0 0.0
    %601 = vmatpush1.msra.mxu0 0.0
    %602 = vmatprep.subr.mxu0 0.0
    %603 = vmatpush1.msra.mxu0 0.0
    %604 = vmatprep.subr.mxu0 0.0
    %605 = vmatpush1.msra.mxu0 0.0
    %606 = vmatprep.subr.mxu0 0.0
    %607 = vmatpush1.msra.mxu0 0.0
    %608 = vmatprep.subr.mxu0 0.0
    %609 = vmatpush1.msra.mxu0 0.0
    %610 = vmatprep.subr.mxu0 0.0
    %611 = vmatpush1.msra.mxu0 0.0
    %612 = vmatprep.mubr.f32.mxu0 0.0
    %613 = vmatmul.mubr.f32.gmra.mrb[0].mxu0 %v273
    %v614 = vpop.f32.mrb[0].mxu0
    %v615 = vadd.f32 0.0, %v614
    %v616 = vpop.f32.mrb[0].mxu0
    %617 = vdwg.mxu0
    %v618 = vsel %vm40, %v615, 0.0
    %619 = vst [vmem:[%s5] sm:$0x1] %v345
    %620 = vst [vmem:[%s6] sm:$0x1] %v618
    %p621 = scmp.eq.s32.totalorder 0, 0
    // Predicated region
    $region22: #{adversarial_forward.1} parent=1 // pred_check
      %p622 = pneg %p621
    $region23: #{adversarial_forward.1} parent=1 // pred_check_branch
      %624 = sbr.rel (%p622) target = $region25
    $region24: #{adversarial_forward.1} parent=1 // pred_region
      %vm625 = vcmask 0
      %626 = vst.msk [vmem:[#allocation2] sm:$0x1] %vm625, 0.0
      %627 = vst.msk [vmem:[#allocation4] sm:$0x1] %vm625, 0.0
    $region25: #{adversarial_forward.1} parent=1 // pred_fallthru
      _
    %v628 = vld [vmem:[#allocation2] sm:$0x1]
    %vm629 = vcmask 1040384
    %v630 = vsel %vm629, %v345, 0.0
    %631 = vadd.xlane.f32.xlu0 %v630
    %v632 = vpop.xlane.xlu0 %631
    %v633 = vrot.slane %v632, 4
    %v634 = vadd.f32 %v632, %v633
    %v635 = vrot.slane %v634, 2
    %v636 = vadd.f32 %v634, %v635
    %v637 = vrot.slane %v636, 1
    %v638 = vadd.f32 %v636, %v637
    %s639 = vtos %v638
    %v640 = vstv %s639
    %v641 = vmul.f32 %v640, 0.015625
    %v642 = vadd.f32 %v628, %v641
    %vm643 = vcmask 0
    %644 = vst.msk [vmem:[#allocation2] sm:$0x1] %vm643, %v642
    %v645 = vld [vmem:[#allocation4] sm:$0x1]
    %v646 = vsel %vm629, %v618, 0.0
    %647 = vadd.xlane.f32.xlu0 %v646
    %v648 = vpop.xlane.xlu0 %647
    %v649 = vrot.slane %v648, 4
    %v650 = vadd.f32 %v648, %v649
    %v651 = vrot.slane %v650, 2
    %v652 = vadd.f32 %v650, %v651
    %v653 = vrot.slane %v652, 1
    %v654 = vadd.f32 %v652, %v653
    %s655 = vtos %v654
    %v656 = vstv %s655
    %v657 = vmul.f32 %v656, 0.015625
    %v658 = vadd.f32 %v645, %v657
    %659 = vst.msk [vmem:[#allocation4] sm:$0x1] %vm643, %v658
    // Predicated region
    $region26: #{adversarial_forward.1} parent=1 // pred_check
      _
    $region27: #{adversarial_forward.1} parent=1 // pred_check_branch
      %661 = sbr.rel (0) target = $region29
    $region28: #{adversarial_forward.1} parent=1 // pred_region
      _
    $region29: #{adversarial_forward.1} parent=1 // pred_fallthru
      _
    // Predicated region
    $region30: #{adversarial_forward.1} parent=1 // pred_check
      _
    $region31: #{adversarial_forward.1} parent=1 // pred_check_branch
      %663 = sbr.rel (0) target = $region33
    $region32: #{adversarial_forward.1} parent=1 // pred_region
      _
    $region33: #{adversarial_forward.1} parent=1 // pred_fallthru
      _
    // Predicated region
    $region34: #{adversarial_forward.1} parent=1 // pred_check
      _
    $region35: #{adversarial_forward.1} parent=1 // pred_check_branch
      %665 = sbr.rel (0) target = $region37
    $region36: #{adversarial_forward.1} parent=1 // pred_region
      %s667 = ssub.s32 16, 16
      %668 = vsyncadd [#allocation3], %s667
      %s670 = sshll.u32 [#allocation2], 4
      %s671 = int_to_ptr.vmem [resolvable:$true] %s670
      %673 = dma.vmem_to_hbm [thread:$0]  %s671, 16, %s7, [#allocation3]
    $region37: #{adversarial_forward.1} parent=1 // pred_fallthru
      _
    // Predicated region
    $region38: #{adversarial_forward.1} parent=1 // pred_check
      _
    $region39: #{adversarial_forward.1} parent=1 // pred_check_branch
      %675 = sbr.rel (0) target = $region41
    $region40: #{adversarial_forward.1} parent=1 // pred_region
      %s677 = ssub.s32 16, 16
      %678 = vsyncadd [#allocation5], %s677
      %s680 = sshll.u32 [#allocation4], 4
      %s681 = int_to_ptr.vmem [resolvable:$true] %s680
      %683 = dma.vmem_to_hbm [thread:$0]  %s681, 16, %s8, [#allocation5]
    $region41: #{adversarial_forward.1} parent=1 // pred_fallthru
      _
    // Predicated region
    $region42: #{adversarial_forward.1} parent=1 // pred_check
      _
    $region43: #{adversarial_forward.1} parent=1 // pred_check_branch
      %685 = sbr.rel (0) target = $region45
    $region44: #{adversarial_forward.1} parent=1 // pred_region
      _
    $region45: #{adversarial_forward.1} parent=1 // pred_fallthru
      _
    // Predicated region
    $region46: #{adversarial_forward.1} parent=1 // pred_check
      _
    $region47: #{adversarial_forward.1} parent=1 // pred_check_branch
      %687 = sbr.rel (0) target = $region49
    $region48: #{adversarial_forward.1} parent=1 // pred_region
      _
    $region49: #{adversarial_forward.1} parent=1 // pred_fallthru
      _
    // Predicated region
    $region50: #{adversarial_forward.1} parent=1 // pred_check
      _
    $region51: #{adversarial_forward.1} parent=1 // pred_check_branch
      %689 = sbr.rel (0) target = $region53
    $region52: #{adversarial_forward.1} parent=1 // pred_region
      %690 = dma.done [#allocation3], 16
    $region53: #{adversarial_forward.1} parent=1 // pred_fallthru
      _
    // Predicated region
    $region54: #{adversarial_forward.1} parent=1 // pred_check
      _
    $region55: #{adversarial_forward.1} parent=1 // pred_check_branch
      %692 = sbr.rel (0) target = $region57
    $region56: #{adversarial_forward.1} parent=1 // pred_region
      %693 = dma.done [#allocation5], 16
    $region57: #{adversarial_forward.1} parent=1 // pred_fallthru
      _
    %694 = vsyncpa [#allocation3], 1
    %695 = vsyncpa [#allocation5], 1

</llo_original>
